<compile_context>
chip_gen: v7x
topology: tpu7x:2x2x1
jax: 0.10.0
libtpu: 0.0.40
codegen_flags: <defaults>
</compile_context>

<pallas_src>
import math
from functools import partial

import jax
import jax.numpy as jnp
from jax import lax
from jax.experimental import pallas as pl
from jax.experimental.pallas import tpu as pltpu

_NEG_BIG = -1e30  # large finite negative: avoids inf-inf -> NaN in online softmax


# ----------------------------- kernel 1: fused QKV projection -----------------


def _qkv_proj_kernel(x_ref, w_ref, b_ref, o_ref):
    # (TS, E) @ (E, 3*Hp) + (1, 3*Hp) -> (TS, 3*Hp), lane-dense output slab.
    o_ref[...] = (jnp.dot(x_ref[...], w_ref[...],
                          preferred_element_type=jnp.float32)
                  + b_ref[...]).astype(o_ref.dtype)


# ----------------------------- kernel 2: flash attention ----------------------


def _flash_attn_kernel(q_ref, k_ref, v_ref, *rest, has_mask):
    if has_mask:
        mask_ref, o_ref, m_scr, l_scr, acc_scr = rest
    else:
        o_ref, m_scr, l_scr, acc_scr = rest

    ki = pl.program_id(2)

    @pl.when(ki == 0)
    def _init():
        m_scr[...] = jnp.full_like(m_scr, _NEG_BIG)
        l_scr[...] = jnp.zeros_like(l_scr)
        acc_scr[...] = jnp.zeros_like(acc_scr)

    # q already carries the 1/sqrt(head_dim) scale (folded into the weights).
    # q @ k^T without materializing a transpose (contract last dims of both).
    s = lax.dot_general(q_ref[...], k_ref[...],
                        dimension_numbers=(((1,), (1,)), ((), ())),
                        preferred_element_type=jnp.float32)
    if has_mask:
        s = jnp.where(mask_ref[...] == 0, _NEG_BIG, s)

    # Online softmax update.
    m_prev = m_scr[...]
    m_new = jnp.maximum(m_prev, jnp.max(s, axis=-1, keepdims=True))
    alpha = jnp.exp(m_prev - m_new)
    p = jnp.exp(s - m_new)
    l_scr[...] = alpha * l_scr[...] + jnp.sum(p, axis=-1, keepdims=True)
    acc_scr[...] = alpha * acc_scr[...] + jnp.dot(
        p.astype(v_ref.dtype), v_ref[...], preferred_element_type=jnp.float32)
    m_scr[...] = m_new

    @pl.when(ki == pl.num_programs(2) - 1)
    def _finalize():
        o_ref[...] = (acc_scr[...] * pl.reciprocal(l_scr[...], approx=True)
                      ).astype(o_ref.dtype)


# ----------------------------- wrapper -----------------------------------------


def _pick_tile(s, max_tile=256):
    """Largest 128-multiple tile <= max_tile that divides s, else the full axis."""
    if s <= max_tile:
        return s
    cap = (max_tile // 128) * 128
    for cand in range(cap, 0, -128):
        if s % cand == 0:
            return cand
    return s  # fallback: full sequence (keeps divisibility / (8,128) rules happy)


def attention_head(hidden_states, wq, bq, wk, bk, wv, bv, attention_mask=None,
                   *, q_tile=None, kv_tile=None, row_tile=None):
    """hidden_states: [B, S, E]; w*: [E, H]; b*: [H]; attention_mask: [B, S, S] or None."""
    B, S, E = hidden_states.shape
    H = wq.shape[1]
    dtype = hidden_states.dtype

    # Lane-dense head dim (multiple of 128).  Zero padding is exact: padded q/k
    # columns contribute 0 to the scores and padded v columns give 0 outputs.
    Hp = max(128, ((H + 127) // 128) * 128)
    scale = 1.0 / math.sqrt(H)

    def pad_w(w, s=1.0):
        return jnp.pad(w * s, ((0, 0), (0, Hp - H))).astype(dtype)

    def pad_b(b, s=1.0):
        return jnp.pad(b * s, (0, Hp - H)).astype(dtype)

    # Fold the softmax scale into the Q projection; fuse Q/K/V into one matmul.
    w_qkv = jnp.concatenate([pad_w(wq, scale), pad_w(wk), pad_w(wv)], axis=1)    # (E, 3*Hp)
    b_qkv = jnp.concatenate([pad_b(bq, scale), pad_b(bk), pad_b(bv)]).reshape(1, 3 * Hp)

    # --- kernel 1: project every row exactly once -> fused [B, S, 3*Hp] slab ---
    TS = row_tile or _pick_tile(S, 512)
    qkv = pl.pallas_call(
        _qkv_proj_kernel,
        out_shape=jax.ShapeDtypeStruct((B, S, 3 * Hp), dtype),
        grid_spec=pltpu.PrefetchScalarGridSpec(
            num_scalar_prefetch=0,
            grid=(B, S // TS),
            in_specs=[
                pl.BlockSpec((None, TS, E), lambda b, i: (b, i, 0)),
                pl.BlockSpec((E, 3 * Hp), lambda b, i: (0, 0)),
                pl.BlockSpec((1, 3 * Hp), lambda b, i: (0, 0)),
            ],
            out_specs=pl.BlockSpec((None, TS, 3 * Hp), lambda b, i: (b, i, 0))),
        compiler_params=pltpu.CompilerParams(
            dimension_semantics=("parallel", "parallel"),
            vmem_limit_bytes=64 * 1024 * 1024),
    )(hidden_states, w_qkv, b_qkv)

    # --- kernel 2: flash attention over the projected q/k/v -------------------
    TQ = q_tile or _pick_tile(S)
    TK = kv_tile or _pick_tile(S)
    grid = (B, S // TQ, S // TK)

    has_mask = attention_mask is not None
    kernel = partial(_flash_attn_kernel, has_mask=has_mask)

    # q / k / v are views into the fused qkv slab via the last-axis block index.
    in_specs = [
        pl.BlockSpec((None, TQ, Hp), lambda b, qi, ki: (b, qi, 0)),  # q tile
        pl.BlockSpec((None, TK, Hp), lambda b, qi, ki: (b, ki, 1)),  # k tile
        pl.BlockSpec((None, TK, Hp), lambda b, qi, ki: (b, ki, 2)),  # v tile
    ]
    args = [qkv, qkv, qkv]
    if has_mask:
        in_specs.append(pl.BlockSpec((None, TQ, TK), lambda b, qi, ki: (b, qi, ki)))
        args.append(attention_mask.astype(jnp.int8))     # 4x less mask bandwidth

    out = pl.pallas_call(
        kernel,
        out_shape=jax.ShapeDtypeStruct((B, S, Hp), dtype),
        grid_spec=pltpu.PrefetchScalarGridSpec(
            num_scalar_prefetch=0,
            grid=grid,
            in_specs=in_specs,
            out_specs=pl.BlockSpec((None, TQ, Hp), lambda b, qi, ki: (b, qi, 0)),
            scratch_shapes=[
                pltpu.VMEM((TQ, 1), jnp.float32),   # running max
                pltpu.VMEM((TQ, 1), jnp.float32),   # running sum
                pltpu.VMEM((TQ, Hp), jnp.float32),  # output accumulator
            ]),
        compiler_params=pltpu.CompilerParams(
            dimension_semantics=("parallel", "parallel", "arbitrary"),
            vmem_limit_bytes=64 * 1024 * 1024),
    )(*args)
    return out[..., :H] if Hp != H else out


# ----------------------------- reference & test --------------------------------


def _reference(hidden_states, wq, bq, wk, bk, wv, bv, attention_mask=None):
    q = hidden_states @ wq + bq
    k = hidden_states @ wk + bk
    v = hidden_states @ wv + bv
    scores = jnp.einsum("bqd,bkd->bqk", q, k) / math.sqrt(q.shape[-1])
    if attention_mask is not None:
        scores = jnp.where(attention_mask == 0, -jnp.inf, scores)
    w = jax.nn.softmax(scores, axis=-1)
    return jnp.einsum("bqk,bkd->bqd", w, v)


if __name__ == "__main__":
    B, S, E, H = 2, 8, 32, 16

    key = jax.random.PRNGKey(0)
    kx, kq, kbq, kk, kbk, kv_, kbv = jax.random.split(key, 7)

    x = jax.random.normal(kx, (B, S, E), dtype=jnp.float32)
    # nn.Linear default init ~ U(-1/sqrt(E), 1/sqrt(E)); stored transposed as [E, H]
    lim = 1.0 / math.sqrt(E)
    wq = jax.random.uniform(kq, (E, H), minval=-lim, maxval=lim, dtype=jnp.float32)
    bq = jax.random.uniform(kbq, (H,), minval=-lim, maxval=lim, dtype=jnp.float32)
    wk = jax.random.uniform(kk, (E, H), minval=-lim, maxval=lim, dtype=jnp.float32)
    bk = jax.random.uniform(kbk, (H,), minval=-lim, maxval=lim, dtype=jnp.float32)
    wv = jax.random.uniform(kv_, (E, H), minval=-lim, maxval=lim, dtype=jnp.float32)
    bv = jax.random.uniform(kbv, (H,), minval=-lim, maxval=lim, dtype=jnp.float32)

    # No-mask variant (no S*S ones tensor is materialized).
    out = jax.block_until_ready(attention_head(x, wq, bq, wk, bk, wv, bv))
    ref = _reference(x, wq, bq, wk, bk, wv, bv)
    assert out.shape == (B, S, H)
    # Slightly looser tolerance: softmax denominator uses the EUP approximate reciprocal.
    assert jnp.allclose(out, ref, atol=5e-3, rtol=5e-3), "no-mask mismatch vs reference"

    # Masked (causal) variant.
    causal = jnp.broadcast_to(jnp.tril(jnp.ones((S, S), jnp.int32)), (B, S, S))
    out_m = jax.block_until_ready(
        attention_head(x, wq, bq, wk, bk, wv, bv, attention_mask=causal))
    ref_m = _reference(x, wq, bq, wk, bk, wv, bv, attention_mask=causal)
    assert jnp.allclose(out_m, ref_m, atol=5e-3, rtol=5e-3), "masked mismatch vs reference"

    print("KERNEL_OK")
</pallas_src>

<mosaic_0001>
module attributes {stable_mosaic.version = 11 : i64} {
  func.func @_qkv_proj_kernel(%arg0: i32, %arg1: i32, %arg2: memref<1x8x32xf32, #tpu.memory_space<vmem>>, %arg3: memref<32x384xf32, #tpu.memory_space<vmem>>, %arg4: memref<1x384xf32, #tpu.memory_space<vmem>>, %arg5: memref<1x8x384xf32, #tpu.memory_space<vmem>>) attributes {dimension_semantics = [#tpu.dimension_semantics<parallel>, #tpu.dimension_semantics<parallel>], iteration_bounds = array<i64: 2, 1>, scalar_prefetch = 0 : i64, scratch_operands = 0 : i64, tpu.core_type = #tpu.core_type<tc>, window_params = [{transform_indices = @transform_0, window_bounds = array<i64: 1, 8, 32>}, {pipeline_mode = #tpu.pipeline_mode<synchronous>, transform_indices = @transform_1, window_bounds = array<i64: 32, 384>}, {pipeline_mode = #tpu.pipeline_mode<synchronous>, transform_indices = @transform_2, window_bounds = array<i64: 1, 384>}, {transform_indices = @transform_3, window_bounds = array<i64: 1, 8, 384>}]} {
    %c0 = arith.constant 0 : index
    %c0_0 = arith.constant 0 : index
    %c0_1 = arith.constant 0 : index
    %0 = vector.load %arg2[%c0, %c0_0, %c0_1] : memref<1x8x32xf32, #tpu.memory_space<vmem>>, vector<1x8x32xf32>
    %1 = vector.shape_cast %0 : vector<1x8x32xf32> to vector<8x32xf32>
    %c0_2 = arith.constant 0 : index
    %c0_3 = arith.constant 0 : index
    %2 = vector.load %arg3[%c0_2, %c0_3] : memref<32x384xf32, #tpu.memory_space<vmem>>, vector<32x384xf32>
    %cst = arith.constant dense<0.000000e+00> : vector<8x384xf32>
    %3 = tpu.matmul %1, %2, %cst {dimension_numbers = #tpu.dot_dimension_numbers<[1], [0], [0], [1], [0, 0, 1, 1], [], []>} : vector<8x32xf32>, vector<32x384xf32>, vector<8x384xf32> -> vector<8x384xf32>
    %c0_4 = arith.constant 0 : index
    %c0_5 = arith.constant 0 : index
    %4 = vector.load %arg4[%c0_4, %c0_5] : memref<1x384xf32, #tpu.memory_space<vmem>>, vector<1x384xf32>
    %5 = vector.broadcast %4 : vector<1x384xf32> to vector<8x384xf32>
    %6 = arith.addf %3, %5 : vector<8x384xf32>
    %c0_6 = arith.constant 0 : index
    %c0_7 = arith.constant 0 : index
    %c0_8 = arith.constant 0 : index
    %7 = vector.load %arg5[%c0_6, %c0_7, %c0_8] : memref<1x8x384xf32, #tpu.memory_space<vmem>>, vector<1x8x384xf32>
    %8 = vector.shape_cast %7 : vector<1x8x384xf32> to vector<8x384xf32>
    %9 = vector.shape_cast %6 : vector<8x384xf32> to vector<1x8x384xf32>
    tpu.vector_store %arg5[%c0_6, %c0_7, %c0_8], %9 {strides = array<i32>} : memref<1x8x384xf32, #tpu.memory_space<vmem>>, vector<1x8x384xf32>,
    return
  }
  func.func @transform_0(%arg0: i32, %arg1: i32) -> (i32, i32, i32) {
    %c0_i32 = arith.constant 0 : i32
    %c0_i32_0 = arith.constant 0 : i32
    return %arg0, %arg1, %c0_i32 : i32, i32, i32
  }
  func.func @transform_1(%arg0: i32, %arg1: i32) -> (i32, i32) {
    %c0_i32 = arith.constant 0 : i32
    %c0_i32_0 = arith.constant 0 : i32
    %c0_i32_1 = arith.constant 0 : i32
    return %c0_i32, %c0_i32_0 : i32, i32
  }
  func.func @transform_2(%arg0: i32, %arg1: i32) -> (i32, i32) {
    %c0_i32 = arith.constant 0 : i32
    %c0_i32_0 = arith.constant 0 : i32
    %c0_i32_1 = arith.constant 0 : i32
    return %c0_i32, %c0_i32_0 : i32, i32
  }
  func.func @transform_3(%arg0: i32, %arg1: i32) -> (i32, i32, i32) {
    %c0_i32 = arith.constant 0 : i32
    %c0_i32_0 = arith.constant 0 : i32
    return %arg0, %arg1, %c0_i32 : i32, i32, i32
  }
}

</mosaic_0001>

<llo_original>
// kernel: tpu_custom_call.1
$region0: #{tpu_custom_call.1}
  #allocation0 [shape = 'u32[]', space=smem, size = 0x4, offset = 0x4, fixed_abs, tag = 'smem constant byte address 0x4 - core index']
  #allocation1 [shape = 'u32[144,128]{1,0:T(1,128)}', space=vmem, size = 0x12000, scoped, tag = 'internal scratch']
  %s0 = inlined_call_operand.hbm [shape: f32[2,8,32], index: 0, kind: input, shape index: {}]
  %s1 = inlined_call_operand.hbm [shape: f32[32,384], index: 1, kind: input, shape index: {}]
  %s2 = inlined_call_operand.hbm [shape: f32[1,384], index: 2, kind: input, shape index: {}]
  %s3 = inlined_call_operand.hbm [shape: f32[2,8,384], index: 3, kind: output, shape index: {}]
  %s4 = sld [smem:[#allocation0]]
  $region57: #{tpu_custom_call.1} parent=0
    _
  %s6 = ssub.s32 1, %s4
  %s7 = scalar_select 0, %s6, %s4
  $region1: #{tpu_custom_call.1} parent=0
    #allocation2 [shape = 'u8[8192]{0}', space=vmem, size = 0x2000, scoped, tag = 'input window, operand 0']
    #allocation3 [shape = 's32[2]{0}', space=sflag, size = 0x8, scoped, tag = 'scoped memory for tpu_custom_call.1']
    #allocation4 [shape = 's32[2]{0}', space=sflag, size = 0x8, scoped, tag = 'scoped memory for tpu_custom_call.1']
    #allocation5 [shape = 'u8[49152]{0}', space=vmem, size = 0xc000, scoped, tag = 'input window, operand 1, single buffered']
    #allocation6 [shape = 's32[1]{0}', space=sflag, size = 0x4, scoped, tag = 'scoped memory for tpu_custom_call.1']
    #allocation7 [shape = 'u8[1536]{0}', space=vmem, size = 0x800, scoped, tag = 'input window, operand 2, single buffered']
    #allocation8 [shape = 'u8[24576]{0}', space=vmem, size = 0x6000, scoped, tag = 'output window, operand 0']
    %8 = vsyncpa [#allocation3], 0
    %s9 = scalar_lea.sflag [#allocation3], 1
    %10 = vsyncpa %s9, 0
    %11 = vsyncpa [#allocation6], 0
    %12 = vsyncpa [#allocation4], 0
    %s13 = scalar_lea.sflag [#allocation4], 1
    %14 = vsyncpa %s13, 0
    loop: start=0, step=1, limit=4
    $region2: #{tpu_custom_call.1} parent=1 // loop_pre_header
      _
    $region3: #{tpu_custom_call.1} parent=1 // loop_header
      %s16 = sphi 0, %s20
      %p17 = scmp.ge.s32.totalorder %s16, 4
      %s23 = sphi 0, %s35
      %s24 = sphi 0, %s31
      %s25 = sphi 0, %s23
      %s26 = sphi 0, %s24
      %s27 = sphi 0, %s25
      %s28 = sphi 0, %s26
      %s40 = sphi 0, %s42
      %s43 = sphi 0, %s40
      %s44 = sphi 0, %s43
      %s60 = sphi 0, %s44
      %s64 = sphi 0, %s64
      %s66 = sphi 0, %s64
      %s67 = sphi 0, %s66
      %s81 = sphi 0, %s67
      %s85 = sphi 0, %s85
      %s87 = sphi 0, %s85
      %s88 = sphi 0, %s87
      %s102 = sphi 0, %s88
      %s110 = sphi 0, %s112
      %s113 = sphi 0, %s110
      %s114 = sphi 0, %s113
      %s130 = sphi 0, %s114
    $region4: #{tpu_custom_call.1} parent=1 // loop_header_branch
      %19 = sbr.rel (%p17) target = $region8
    $region5: #{tpu_custom_call.1} parent=1 // loop_body
      %s21 = ssub.s32 %s16, 1
      %s22 = ssub.s32 %s16, 2
      %s29 = sadd.s32 1, %s24
      %p30 = scmp.ge.s32.totalorder %s29, 1
      %s31 = scalar_select %p30, 0, %s29
      %s32 = sadd.s32 1, %s23
      %s33 = scalar_select %p30, %s32, %s23
      %p34 = scmp.ge.s32.totalorder %s33, 2
      %s35 = scalar_select %p34, 0, %s33
      %s36 = ssub.s32 %s23, %s35
      %s37 = ssub.s32 %s24, %s31
      %s38 = sor.u32 %s36, %s37
      %p39 = scmp.eq.s32.totalorder %s38, 0
      %s41 = sadd.s32 %s40, 1
      %s42 = scalar_select %p39, %s40, %s41
      %p45 = pneg %p39
      %p46 = scmp.eq.s32.totalorder %s16, 1
      %p47 = por %p45, %p46
      %p48 = scmp.ne.s32.totalorder %s40, %s43
      %p49 = scmp.eq.s32.totalorder %s16, 0
      %p50 = por %p48, %p49
      %p51 = scmp.ne.s32.totalorder %s40, %s43
      %p52 = scmp.eq.s32.totalorder %s21, 1
      %p53 = por %p51, %p52
      %p54 = scmp.ne.s32.totalorder %s43, %s44
      %p55 = scmp.eq.s32.totalorder %s21, 0
      %p56 = por %p54, %p55
      %p57 = scmp.ne.s32.totalorder %s43, %s44
      %p58 = scmp.eq.s32.totalorder %s22, 1
      %p59 = por %p57, %p58
      %p61 = scmp.ne.s32.totalorder %s44, %s60
      %p62 = scmp.eq.s32.totalorder %s22, 0
      %p63 = por %p61, %p62
      %s65 = sadd.s32 %s64, 1
      %p68 = scmp.eq.s32.totalorder %s16, 1
      %p69 = scmp.ne.s32.totalorder %s64, %s66
      %p70 = scmp.eq.s32.totalorder %s16, 0
      %p71 = por %p69, %p70
      %p72 = scmp.ne.s32.totalorder %s64, %s66
      %p73 = scmp.eq.s32.totalorder %s21, 1
      %p74 = por %p72, %p73
      %p75 = scmp.ne.s32.totalorder %s66, %s67
      %p76 = scmp.eq.s32.totalorder %s21, 0
      %p77 = por %p75, %p76
      %p78 = scmp.ne.s32.totalorder %s66, %s67
      %p79 = scmp.eq.s32.totalorder %s22, 1
      %p80 = por %p78, %p79
      %p82 = scmp.ne.s32.totalorder %s67, %s81
      %p83 = scmp.eq.s32.totalorder %s22, 0
      %p84 = por %p82, %p83
      %s86 = sadd.s32 %s85, 1
      %p89 = scmp.eq.s32.totalorder %s16, 1
      %p90 = scmp.ne.s32.totalorder %s85, %s87
      %p91 = scmp.eq.s32.totalorder %s16, 0
      %p92 = por %p90, %p91
      %p93 = scmp.ne.s32.totalorder %s85, %s87
      %p94 = scmp.eq.s32.totalorder %s21, 1
      %p95 = por %p93, %p94
      %p96 = scmp.ne.s32.totalorder %s87, %s88
      %p97 = scmp.eq.s32.totalorder %s21, 0
      %p98 = por %p96, %p97
      %p99 = scmp.ne.s32.totalorder %s87, %s88
      %p100 = scmp.eq.s32.totalorder %s22, 1
      %p101 = por %p99, %p100
      %p103 = scmp.ne.s32.totalorder %s88, %s102
      %p104 = scmp.eq.s32.totalorder %s22, 0
      %p105 = por %p103, %p104
      %s106 = ssub.s32 %s23, %s35
      %s107 = ssub.s32 %s24, %s31
      %s108 = sor.u32 %s106, %s107
      %p109 = scmp.eq.s32.totalorder %s108, 0
      %s111 = sadd.s32 %s110, 1
      %s112 = scalar_select %p109, %s110, %s111
      %p115 = pneg %p109
      %p116 = scmp.eq.s32.totalorder %s16, 1
      %p117 = por %p115, %p116
      %p118 = scmp.ne.s32.totalorder %s110, %s113
      %p119 = scmp.eq.s32.totalorder %s16, 0
      %p120 = por %p118, %p119
      %p121 = scmp.ne.s32.totalorder %s110, %s113
      %p122 = scmp.eq.s32.totalorder %s21, 1
      %p123 = por %p121, %p122
      %p124 = scmp.ne.s32.totalorder %s113, %s114
      %p125 = scmp.eq.s32.totalorder %s21, 0
      %p126 = por %p124, %p125
      %p127 = scmp.ne.s32.totalorder %s113, %s114
      %p128 = scmp.eq.s32.totalorder %s22, 1
      %p129 = por %p127, %p128
      %p131 = scmp.ne.s32.totalorder %s114, %s130
      %p132 = scmp.eq.s32.totalorder %s22, 0
      %p133 = por %p131, %p132
      %p134 = scmp.le.s32.totalorder 1, %s16
      %p135 = scmp.lt.s32.totalorder %s16, 3
      %p136 = pnand %p134, %p135
      %p137 = pneg %p136
      // Predicated region
      $region9: #{tpu_custom_call.1} parent=5 // pred_check
        _
      $region10: #{tpu_custom_call.1} parent=5 // pred_check_branch
        %139 = sbr.rel (%p136) target = $region12
      $region11: #{tpu_custom_call.1} parent=5 // pred_region
        %s140 = ssub.s32 %s16, 1
        // Predicated region
        $region13: #{tpu_custom_call.1} parent=11 // pred_check
          %p141 = pneg %p77
        $region14: #{tpu_custom_call.1} parent=11 // pred_check_branch
          %143 = sbr.rel (%p141) target = $region16
        $region15: #{tpu_custom_call.1} parent=11 // pred_region
          %s145 = ssub.s32 1536, 1536
          %146 = vsyncadd [#allocation6], %s145
          %s147 = sshll.u32 [#allocation5], 4
          %s148 = int_to_ptr.vmem [resolvable:$true] %s147
          %153 = dma.hbm_to_vmem [thread:$0]  %s1, 1536, %s148, [#allocation6], 384, 384, 24
        $region16: #{tpu_custom_call.1} parent=11 // pred_fallthru
          _
        // Predicated region
        $region17: #{tpu_custom_call.1} parent=11 // pred_check
          %p154 = pneg %p98
        $region18: #{tpu_custom_call.1} parent=11 // pred_check_branch
          %156 = sbr.rel (%p154) target = $region20
        $region19: #{tpu_custom_call.1} parent=11 // pred_region
          %s158 = ssub.s32 48, 48
          %159 = vsyncadd [#allocation6], %s158
          %s161 = sshll.u32 [#allocation7], 4
          %s162 = int_to_ptr.vmem [resolvable:$true] %s161
          %164 = dma.hbm_to_vmem [thread:$0]  %s2, 48, %s162, [#allocation6]
        $region20: #{tpu_custom_call.1} parent=11 // pred_fallthru
          _
      $region12: #{tpu_custom_call.1} parent=5 // pred_fallthru
        _
      %p165 = scmp.lt.s32.totalorder %s16, 2
      // Predicated region
      $region21: #{tpu_custom_call.1} parent=5 // pred_check
        %p166 = pneg %p165
      $region22: #{tpu_custom_call.1} parent=5 // pred_check_branch
        %168 = sbr.rel (%p166) target = $region24
      $region23: #{tpu_custom_call.1} parent=5 // pred_region
        // Predicated region
        $region25: #{tpu_custom_call.1} parent=23 // pred_check
          %p169 = pneg %p50
        $region26: #{tpu_custom_call.1} parent=23 // pred_check_branch
          %171 = sbr.rel (%p169) target = $region28
        $region27: #{tpu_custom_call.1} parent=23 // pred_region
          %s172 = sand.u32 %s40, 1
          %s173 = scalar_lea.sflag [#allocation3], %s172
          %s174 = sand.u32 %s40, 1
          %s175 = smul.addr %s174, 8
          %s176 = scalar_lea.vmem [#allocation2], %s175
          %s178 = ssub.s32 128, 128
          %179 = vsyncadd %s173, %s178
          %s180 = sadd.s32 %s24, %s23
          %s181 = smul.addr %s180, 128
          %s182 = scalar_lea.hbm %s0, %s181
          %s184 = sshll.u32 %s176, 4
          %s185 = int_to_ptr.vmem [resolvable:$true] %s184
          %187 = dma.hbm_to_vmem [thread:$0]  %s182, 128, %s185, %s173
        $region28: #{tpu_custom_call.1} parent=23 // pred_fallthru
          _
      $region24: #{tpu_custom_call.1} parent=5 // pred_fallthru
        _
      %p188 = scmp.le.s32.totalorder 1, %s16
      %p189 = scmp.lt.s32.totalorder %s16, 3
      %p190 = pnand %p188, %p189
      %p191 = pneg %p190
      // Predicated region
      $region29: #{tpu_custom_call.1} parent=5 // pred_check
        _
      $region30: #{tpu_custom_call.1} parent=5 // pred_check_branch
        %193 = sbr.rel (%p190) target = $region32
      $region31: #{tpu_custom_call.1} parent=5 // pred_region
        %s194 = ssub.s32 %s16, 1
        %s195 = sand.u32 %s43, 1
        %s196 = scalar_lea.sflag [#allocation3], %s195
        %s197 = sand.u32 %s43, 1
        %s198 = smul.addr %s197, 8
        %s199 = scalar_lea.vmem [#allocation2], %s198
        // Predicated region
        $region33: #{tpu_custom_call.1} parent=31 // pred_check
          %p200 = pneg %p56
        $region34: #{tpu_custom_call.1} parent=31 // pred_check_branch
          %202 = sbr.rel (%p200) target = $region36
        $region35: #{tpu_custom_call.1} parent=31 // pred_region
          %203 = dma.done %s196, 128
        $region36: #{tpu_custom_call.1} parent=31 // pred_fallthru
          _
        // Predicated region
        $region37: #{tpu_custom_call.1} parent=31 // pred_check
          %p204 = pneg %p77
        $region38: #{tpu_custom_call.1} parent=31 // pred_check_branch
          %206 = sbr.rel (%p204) target = $region40
        $region39: #{tpu_custom_call.1} parent=31 // pred_region
          %207 = dma.done [#allocation6], 1536
        $region40: #{tpu_custom_call.1} parent=31 // pred_fallthru
          _
        // Predicated region
        $region41: #{tpu_custom_call.1} parent=31 // pred_check
          %p208 = pneg %p98
        $region42: #{tpu_custom_call.1} parent=31 // pred_check_branch
          %210 = sbr.rel (%p208) target = $region44
        $region43: #{tpu_custom_call.1} parent=31 // pred_region
          %211 = dma.done [#allocation6], 48
        $region44: #{tpu_custom_call.1} parent=31 // pred_fallthru
          _
        %s212 = sand.u32 %s43, 1
        %s213 = scalar_lea.sflag [#allocation3], %s212
        %s214 = sand.u32 %s43, 1
        %s215 = smul.addr %s214, 8
        %s216 = scalar_lea.vmem [#allocation2], %s215
        %p217 = pneg %p56
        %p218 = pneg %p53
        %p219 = pneg %p77
        %p220 = pneg %p74
        %p221 = pneg %p98
        %p222 = pneg %p95
        %p223 = pneg %p126
        %p224 = pneg %p123
        %s225 = sand.u32 %s113, 1
        %s226 = scalar_lea.sflag [#allocation4], %s225
        %s227 = sand.u32 %s113, 1
        %s228 = smul.addr %s227, 24
        %s229 = scalar_lea.vmem [#allocation8], %s228
        %v230 = vld [vmem:[%s199] sm:$0xff]
        %v231 = vld [vmem:[#allocation5] sm:$0xff]
        %v232 = vld [vmem:[#allocation5 + $0x8] sm:$0xff]
        %v233 = vld [vmem:[#allocation5 + $0x10] sm:$0xff]
        %v234 = vld [vmem:[#allocation5 + $0x18] sm:$0xff]
        %v235 = vld [vmem:[#allocation5 + $0x20] sm:$0xff]
        %v236 = vld [vmem:[#allocation5 + $0x28] sm:$0xff]
        %v237 = vld [vmem:[#allocation5 + $0x30] sm:$0xff]
        %v238 = vld [vmem:[#allocation5 + $0x38] sm:$0xff]
        %v239 = vld [vmem:[#allocation5 + $0x40] sm:$0xff]
        %v240 = vld [vmem:[#allocation5 + $0x48] sm:$0xff]
        %v241 = vld [vmem:[#allocation5 + $0x50] sm:$0xff]
        %v242 = vld [vmem:[#allocation5 + $0x58] sm:$0xff]
        %v243 = vld [vmem:[#allocation7] sm:$0x7]
        %v245 = vlaneseq
        %v246 = vshrl.u32 %v245, 7
        %v247 = vsub.s32 0, %v246
        %v248 = vrot.slane %v243, %v247
        %v249 = vlaneseq
        %v250 = vshrl.u32 %v249, 7
        %v251 = vsub.s32 1, %v250
        %v252 = vrot.slane %v243, %v251
        %v253 = vlaneseq
        %v254 = vshrl.u32 %v253, 7
        %v255 = vsub.s32 2, %v254
        %v256 = vrot.slane %v243, %v255
        %vm260 = vcmask 261120
        %v262 = vsel %vm260, %v230, 0
        %264 = vmatprep.subr.mxu0 %v232
        %265 = vmatpush1.msra.mxu0 %v231
        %266 = vmatprep.subr.mxu0 %v235
        %267 = vmatpush1.msra.mxu0 %v234
        %268 = vmatprep.subr.mxu0 %v238
        %269 = vmatpush1.msra.mxu0 %v237
        %270 = vmatprep.subr.mxu0 %v241
        %271 = vmatpush1.msra.mxu0 %v240
        %272 = vmatprep.subr.mxu0 0.0
        %273 = vmatpush1.msra.mxu0 0.0
        %274 = vmatprep.subr.mxu0 0.0
        %275 = vmatpush1.msra.mxu0 0.0
        %276 = vmatprep.subr.mxu0 0.0
        %277 = vmatpush1.msra.mxu0 0.0
        %278 = vmatprep.subr.mxu0 0.0
        %279 = vmatpush1.msra.mxu0 0.0
        %280 = vmatprep.subr.mxu0 0.0
        %281 = vmatpush1.msra.mxu0 0.0
        %282 = vmatprep.subr.mxu0 0.0
        %283 = vmatpush1.msra.mxu0 0.0
        %284 = vmatprep.subr.mxu0 0.0
        %285 = vmatpush1.msra.mxu0 0.0
        %286 = vmatprep.subr.mxu0 0.0
        %287 = vmatpush1.msra.mxu0 0.0
        %288 = vmatprep.subr.mxu0 0.0
        %289 = vmatpush1.msra.mxu0 0.0
        %290 = vmatprep.subr.mxu0 0.0
        %291 = vmatpush1.msra.mxu0 0.0
        %292 = vmatprep.subr.mxu0 0.0
        %293 = vmatpush1.msra.mxu0 0.0
        %294 = vmatprep.subr.mxu0 0.0
        %295 = vmatpush1.msra.mxu0 0.0
        %296 = vmatprep.subr.mxu0 0.0
        %297 = vmatpush1.msra.mxu0 0.0
        %298 = vmatprep.subr.mxu0 0.0
        %299 = vmatpush1.msra.mxu0 0.0
        %300 = vmatprep.subr.mxu0 0.0
        %301 = vmatpush1.msra.mxu0 0.0
        %302 = vmatprep.subr.mxu0 0.0
        %303 = vmatpush1.msra.mxu0 0.0
        %304 = vmatprep.subr.mxu0 0.0
        %305 = vmatpush1.msra.mxu0 0.0
        %306 = vmatprep.subr.mxu0 0.0
        %307 = vmatpush1.msra.mxu0 0.0
        %308 = vmatprep.subr.mxu0 0.0
        %309 = vmatpush1.msra.mxu0 0.0
        %310 = vmatprep.subr.mxu0 0.0
        %311 = vmatpush1.msra.mxu0 0.0
        %312 = vmatprep.subr.mxu0 0.0
        %313 = vmatpush1.msra.mxu0 0.0
        %314 = vmatprep.subr.mxu0 0.0
        %315 = vmatpush1.msra.mxu0 0.0
        %316 = vmatprep.subr.mxu0 0.0
        %317 = vmatpush1.msra.mxu0 0.0
        %318 = vmatprep.subr.mxu0 0.0
        %319 = vmatpush1.msra.mxu0 0.0
        %320 = vmatprep.subr.mxu0 0.0
        %321 = vmatpush1.msra.mxu0 0.0
        %322 = vmatprep.subr.mxu0 0.0
        %323 = vmatpush1.msra.mxu0 0.0
        %324 = vmatprep.subr.mxu0 0.0
        %325 = vmatpush1.msra.mxu0 0.0
        %326 = vmatprep.subr.mxu0 0.0
        %327 = vmatpush1.msra.mxu0 0.0
        %328 = vmatprep.mubr.f32.mxu0 0.0
        %329 = vmatmul.mubr.f32.gmra.mrb[0].mxu0 %v262
        %v330 = vpop.f32.mrb[0].mxu0
        %v331 = vadd.f32 %v248, %v330
        %v332 = vpop.f32.mrb[0].mxu0
        %v333 = vadd.f32 %v252, %v332
        %334 = vdwg.mxu0
        %335 = vmatprep.subr.mxu0 0.0
        %336 = vmatpush1.msra.mxu0 %v233
        %337 = vmatprep.subr.mxu0 0.0
        %338 = vmatpush1.msra.mxu0 %v236
        %339 = vmatprep.subr.mxu0 0.0
        %340 = vmatpush1.msra.mxu0 %v239
        %341 = vmatprep.subr.mxu0 0.0
        %342 = vmatpush1.msra.mxu0 %v242
        %343 = vmatprep.subr.mxu0 0.0
        %344 = vmatpush1.msra.mxu0 0.0
        %345 = vmatprep.subr.mxu0 0.0
        %346 = vmatpush1.msra.mxu0 0.0
        %347 = vmatprep.subr.mxu0 0.0
        %348 = vmatpush1.msra.mxu0 0.0
        %349 = vmatprep.subr.mxu0 0.0
        %350 = vmatpush1.msra.mxu0 0.0
        %351 = vmatprep.subr.mxu0 0.0
        %352 = vmatpush1.msra.mxu0 0.0
        %353 = vmatprep.subr.mxu0 0.0
        %354 = vmatpush1.msra.mxu0 0.0
        %355 = vmatprep.subr.mxu0 0.0
        %356 = vmatpush1.msra.mxu0 0.0
        %357 = vmatprep.subr.mxu0 0.0
        %358 = vmatpush1.msra.mxu0 0.0
        %359 = vmatprep.subr.mxu0 0.0
        %360 = vmatpush1.msra.mxu0 0.0
        %361 = vmatprep.subr.mxu0 0.0
        %362 = vmatpush1.msra.mxu0 0.0
        %363 = vmatprep.subr.mxu0 0.0
        %364 = vmatpush1.msra.mxu0 0.0
        %365 = vmatprep.subr.mxu0 0.0
        %366 = vmatpush1.msra.mxu0 0.0
        %367 = vmatprep.subr.mxu0 0.0
        %368 = vmatpush1.msra.mxu0 0.0
        %369 = vmatprep.subr.mxu0 0.0
        %370 = vmatpush1.msra.mxu0 0.0
        %371 = vmatprep.subr.mxu0 0.0
        %372 = vmatpush1.msra.mxu0 0.0
        %373 = vmatprep.subr.mxu0 0.0
        %374 = vmatpush1.msra.mxu0 0.0
        %375 = vmatprep.subr.mxu0 0.0
        %376 = vmatpush1.msra.mxu0 0.0
        %377 = vmatprep.subr.mxu0 0.0
        %378 = vmatpush1.msra.mxu0 0.0
        %379 = vmatprep.subr.mxu0 0.0
        %380 = vmatpush1.msra.mxu0 0.0
        %381 = vmatprep.subr.mxu0 0.0
        %382 = vmatpush1.msra.mxu0 0.0
        %383 = vmatprep.subr.mxu0 0.0
        %384 = vmatpush1.msra.mxu0 0.0
        %385 = vmatprep.subr.mxu0 0.0
        %386 = vmatpush1.msra.mxu0 0.0
        %387 = vmatprep.subr.mxu0 0.0
        %388 = vmatpush1.msra.mxu0 0.0
        %389 = vmatprep.subr.mxu0 0.0
        %390 = vmatpush1.msra.mxu0 0.0
        %391 = vmatprep.subr.mxu0 0.0
        %392 = vmatpush1.msra.mxu0 0.0
        %393 = vmatprep.subr.mxu0 0.0
        %394 = vmatpush1.msra.mxu0 0.0
        %395 = vmatprep.subr.mxu0 0.0
        %396 = vmatpush1.msra.mxu0 0.0
        %397 = vmatprep.subr.mxu0 0.0
        %398 = vmatpush1.msra.mxu0 0.0
        %399 = vmatprep.mubr.f32.mxu0 0.0
        %400 = vmatmul.mubr.f32.gmra.mrb[0].mxu0 %v262
        %v401 = vpop.f32.mrb[0].mxu0
        %v402 = vadd.f32 %v256, %v401
        %v403 = vpop.f32.mrb[0].mxu0
        %404 = vdwg.mxu0
        %405 = vst [vmem:[%s229] sm:$0xff] %v331
        %406 = vst [vmem:[%s229 + $0x8] sm:$0xff] %v333
        %407 = vst [vmem:[%s229 + $0x10] sm:$0xff] %v402
        %s408 = sand.u32 %s113, 1
        %s409 = scalar_lea.sflag [#allocation4], %s408
        %s410 = sand.u32 %s113, 1
        %s411 = smul.addr %s410, 24
        %s412 = scalar_lea.vmem [#allocation8], %s411
        // Predicated region
        $region45: #{tpu_custom_call.1} parent=31 // pred_check
          %p413 = pneg %p123
        $region46: #{tpu_custom_call.1} parent=31 // pred_check_branch
          %415 = sbr.rel (%p413) target = $region48
        $region47: #{tpu_custom_call.1} parent=31 // pred_region
          %s417 = ssub.s32 384, 384
          %418 = vsyncadd %s409, %s417
          %s419 = smul.addr %s26, 3
          %s420 = smul.addr %s25, 3
          %s421 = sadd.s32 %s419, %s420
          %s422 = smul.addr %s421, 128
          %s423 = scalar_lea.hbm %s3, %s422
          %s425 = sshll.u32 %s412, 4
          %s426 = int_to_ptr.vmem [resolvable:$true] %s425
          %428 = dma.vmem_to_hbm [thread:$0]  %s426, 384, %s423, %s409
        $region48: #{tpu_custom_call.1} parent=31 // pred_fallthru
          _
      $region32: #{tpu_custom_call.1} parent=5 // pred_fallthru
        _
      %p429 = scmp.le.s32.totalorder 2, %s16
      // Predicated region
      $region49: #{tpu_custom_call.1} parent=5 // pred_check
        %p430 = pneg %p429
      $region50: #{tpu_custom_call.1} parent=5 // pred_check_branch
        %432 = sbr.rel (%p430) target = $region52
      $region51: #{tpu_custom_call.1} parent=5 // pred_region
        %s433 = ssub.s32 %s16, 2
        // Predicated region
        $region53: #{tpu_custom_call.1} parent=51 // pred_check
          %p434 = pneg %p129
        $region54: #{tpu_custom_call.1} parent=51 // pred_check_branch
          %436 = sbr.rel (%p434) target = $region56
        $region55: #{tpu_custom_call.1} parent=51 // pred_region
          %s437 = sand.u32 %s114, 1
          %s438 = scalar_lea.sflag [#allocation4], %s437
          %s439 = sand.u32 %s114, 1
          %s440 = smul.addr %s439, 24
          %s441 = scalar_lea.vmem [#allocation8], %s440
          %442 = dma.done %s438, 384
        $region56: #{tpu_custom_call.1} parent=51 // pred_fallthru
          _
      $region52: #{tpu_custom_call.1} parent=5 // pred_fallthru
        _
    $region6: #{tpu_custom_call.1} parent=1 // loop_footer
      %s20 = sadd.s32 1, %s16
    $region7: #{tpu_custom_call.1} parent=1 // loop_footer_branch
      %15 = sbr.rel target = $region3
    $region8: #{tpu_custom_call.1} parent=1 // loop_exit
      _
    %443 = vsyncpa [#allocation3], 1
    %s444 = scalar_lea.sflag [#allocation3], 1
    %445 = vsyncpa %s444, 1
    %446 = vsyncpa [#allocation6], 1
    %447 = vsyncpa [#allocation4], 1
    %s448 = scalar_lea.sflag [#allocation4], 1
    %449 = vsyncpa %s448, 1

</llo_original>
